<compile_context>
chip_gen: v6e
topology: v6e:2x2x1
jax: 0.10.0
libtpu: 0.0.40
codegen_flags: <defaults>
</compile_context>

<pallas_src>
import functools

import jax
import jax.numpy as jnp
from jax.experimental import pallas as pl
from jax.experimental.pallas import tpu as pltpu

IN_DIM = 28
HIDDEN1 = 20
HIDDEN2 = 14

# Largest batch tile (lane axis).  f32 @ 16384: x^T / decoded^T ~1.8 MiB each,
# encoded^T ~0.9 MiB, double-buffered ~9 MiB, plus ~4 MiB f32 intermediates —
# comfortably under the 32 MiB vmem_limit_bytes set below on every generation.
_MAX_BATCH_TILE = 16384


def autoencoder_kernel(xt_ref,
                       w1_ref, b1_ref,
                       w2_ref, b2_ref,
                       w34_ref, b34_ref,
                       dec_ref, enc_ref):
    """All blocks are (features, batch_tile): batch lives on the 128-lane axis."""
    xt = xt_ref[...]                                  # (28, TB), io dtype
    w_dtype = w1_ref.dtype

    # Encoder.  MXU matmuls accumulate in f32; bias add + sigmoid stay in f32.
    h = jnp.dot(w1_ref[...], xt, preferred_element_type=jnp.float32)   # (h1, TB)
    h = jax.nn.sigmoid(h + b1_ref[...])

    e = jnp.dot(w2_ref[...], h.astype(w_dtype),
                preferred_element_type=jnp.float32)                    # (h2, TB)
    e = jax.nn.sigmoid(e + b2_ref[...])

    # Decoder: both bias-only linear layers folded into a single matmul.
    d = jnp.dot(w34_ref[...], e.astype(w_dtype),
                preferred_element_type=jnp.float32)                    # (28, TB)
    d = d + b34_ref[...]

    enc_ref[...] = e.astype(enc_ref.dtype)
    dec_ref[...] = d.astype(dec_ref.dtype)


def _batch_tile(batch):
    """Lane-axis tile: multiple of 128, >= ~8 grid steps, capped for VMEM."""
    if batch <= 128:
        return batch                      # a single lane tile cannot be split
    tb = max(128, min(_MAX_BATCH_TILE, pl.cdiv(batch, 8)))
    return (tb // 128) * 128


def _const_spec(shape):
    """Whole-array weight/bias block, VMEM-resident across the whole grid.

    The index_map never changes, so a second pipeline buffer is pure VMEM
    waste -> request single buffering (fall back on JAX versions without
    pipeline_mode support at BlockSpec construction time).
    """
    try:
        return pl.BlockSpec(shape, lambda i: (0, 0), pipeline_mode=pl.Buffered(1))
    except Exception:  # pragma: no cover - older JAX without pipeline_mode
        return pl.BlockSpec(shape, lambda i: (0, 0))


def _forward_t_impl(x_t, params, io_dtype):
    """Lane-dense core.  x_t: (28, B).  Returns (decoded^T (28, B), encoded^T (h2, B))."""
    in_dim, batch = x_t.shape
    hidden1 = params["w1"].shape[0]
    hidden2 = params["w2"].shape[0]

    # Fold the decoder (exact in f32):
    #   d^T = W4 (W3 e^T + b3) + b4 = (W4 @ W3) e^T + (W4 @ b3 + b4)
    w34 = params["w4"] @ params["w3"]                      # (28, hidden2)
    b34 = params["w4"] @ params["b3"] + params["b4"]       # (28,)

    # HBM-facing dtypes: activations/weights in io_dtype, biases kept in f32.
    x_io = x_t.astype(io_dtype)
    w1 = params["w1"].astype(io_dtype)
    w2 = params["w2"].astype(io_dtype)
    w34 = w34.astype(io_dtype)
    b1 = params["b1"].astype(jnp.float32).reshape(hidden1, 1)
    b2 = params["b2"].astype(jnp.float32).reshape(hidden2, 1)
    b34 = b34.astype(jnp.float32).reshape(in_dim, 1)

    tb = _batch_tile(batch)
    grid = (pl.cdiv(batch, tb),)

    batch_spec = lambda feat: pl.BlockSpec((feat, tb), lambda i: (0, i))

    io_bytes = jnp.dtype(io_dtype).itemsize
    cost = pl.CostEstimate(
        flops=2 * batch * (in_dim * hidden1 + hidden1 * hidden2 + hidden2 * in_dim),
        transcendentals=batch * (hidden1 + hidden2),
        bytes_accessed=batch * (2 * in_dim + hidden2) * io_bytes
        + (in_dim * hidden1 + hidden1 * hidden2 + hidden2 * in_dim) * io_bytes,
    )

    dec_t, enc_t = pl.pallas_call(
        autoencoder_kernel,
        grid=grid,
        out_shape=(
            jax.ShapeDtypeStruct((in_dim, batch), io_dtype),    # decoded^T
            jax.ShapeDtypeStruct((hidden2, batch), io_dtype),   # encoded^T
        ),
        in_specs=[
            batch_spec(in_dim),
            _const_spec(w1.shape), _const_spec(b1.shape),
            _const_spec(w2.shape), _const_spec(b2.shape),
            _const_spec(w34.shape), _const_spec(b34.shape),
        ],
        out_specs=(
            batch_spec(in_dim),
            batch_spec(hidden2),
        ),
        compiler_params=pltpu.CompilerParams(
            dimension_semantics=("parallel",),   # batch grid shards across v7x cores
            vmem_limit_bytes=32 * 1024 * 1024,
        ),
        cost_estimate=cost,
    )(x_io, w1, b1, w2, b2, w34, b34)
    return dec_t, enc_t


@functools.partial(jax.jit, static_argnames=("io_dtype",))
def autoencoder_forward_t(x_t, params, io_dtype=jnp.bfloat16):
    """Lane-dense entry point: x_t is (28, B) (batch-minor).

    Preferred for perf-sensitive callers; avoids the wrapper transposes of
    `autoencoder_forward`.  Returns (decoded^T (28, B), encoded^T (hidden2, B)).
    """
    return _forward_t_impl(x_t, params, io_dtype)


@functools.partial(jax.jit, static_argnames=("io_dtype",))
def autoencoder_forward(x, params, io_dtype=jnp.bfloat16):
    """PyTorch-layout entry point: x (B, 28) -> (decoded (B, 28), encoded (B, hidden2)).

    The transposes around the kernel are plain XLA ops outside the kernel;
    callers that can keep data batch-minor should use autoencoder_forward_t.
    """
    dec_t, enc_t = _forward_t_impl(jnp.transpose(x.astype(io_dtype)), params, io_dtype)
    return jnp.transpose(dec_t), jnp.transpose(enc_t)


def init_params(key, hidden1=HIDDEN1, hidden2=HIDDEN2):
    """nn.Linear-style params: w{i}: (out, in), b{i}: (out,), U(-1/sqrt(in), 1/sqrt(in))."""
    dims = [(hidden1, IN_DIM), (hidden2, hidden1), (hidden1, hidden2), (IN_DIM, hidden1)]
    params = {}
    for name, (fan_out, fan_in) in zip("1234", dims):
        key, kw, kb = jax.random.split(key, 3)
        bound = 1.0 / float(fan_in) ** 0.5
        params[f"w{name}"] = jax.random.uniform(
            kw, (fan_out, fan_in), jnp.float32, -bound, bound)
        params[f"b{name}"] = jax.random.uniform(
            kb, (fan_out,), jnp.float32, -bound, bound)
    return params


def reference_forward(x, params):
    """Plain-JAX mirror of the PyTorch module."""
    h = jax.nn.sigmoid(x @ params["w1"].T + params["b1"])
    e = jax.nn.sigmoid(h @ params["w2"].T + params["b2"])
    d = e @ params["w3"].T + params["b3"]
    d = d @ params["w4"].T + params["b4"]
    return d, e


if __name__ == "__main__":
    key = jax.random.PRNGKey(0)
    key, kx1, kx2 = jax.random.split(key, 3)
    params = init_params(key)

    # 1) Small batch, f32 I/O: single grid step (B=8 < one lane tile), tight check.
    x_small = jax.random.normal(kx1, (8, IN_DIM), jnp.float32)
    dec, enc = autoencoder_forward(x_small, params, io_dtype=jnp.float32)
    jax.block_until_ready((dec, enc))
    dec_ref, enc_ref = reference_forward(x_small, params)
    assert dec.shape == (8, IN_DIM) and enc.shape == (8, HIDDEN2)
    assert jnp.allclose(dec, dec_ref, atol=1e-4, rtol=1e-4)
    assert jnp.allclose(enc, enc_ref, atol=1e-4, rtol=1e-4)

    # 2) Ragged multi-step grid, f32 I/O: B=2500 -> tile 256, 10 steps, partial tail block.
    x_rag = jax.random.normal(kx2, (2500, IN_DIM), jnp.float32)
    dec, enc = autoencoder_forward(x_rag, params, io_dtype=jnp.float32)
    jax.block_until_ready((dec, enc))
    dec_ref, enc_ref = reference_forward(x_rag, params)
    assert dec.shape == (2500, IN_DIM) and enc.shape == (2500, HIDDEN2)
    assert jnp.allclose(dec, dec_ref, atol=1e-4, rtol=1e-4)
    assert jnp.allclose(enc, enc_ref, atol=1e-4, rtol=1e-4)

    # 3) Default bf16 I/O (recommended on all generations, incl. v5e): loose check.
    dec_bf, enc_bf = autoencoder_forward(x_rag, params)
    jax.block_until_ready((dec_bf, enc_bf))
    assert jnp.allclose(dec_bf.astype(jnp.float32), dec_ref, atol=5e-2, rtol=5e-2)
    assert jnp.allclose(enc_bf.astype(jnp.float32), enc_ref, atol=5e-2, rtol=5e-2)

    print("KERNEL_OK")
</pallas_src>

<mosaic_0001>
module attributes {stable_mosaic.version = 11 : i64} {
  func.func @autoencoder_kernel(%arg0: i32, %arg1: memref<28x8xf32, #tpu.memory_space<vmem>>, %arg2: memref<20x28xf32, #tpu.memory_space<vmem>>, %arg3: memref<20x1xf32, #tpu.memory_space<vmem>>, %arg4: memref<14x20xf32, #tpu.memory_space<vmem>>, %arg5: memref<14x1xf32, #tpu.memory_space<vmem>>, %arg6: memref<28x14xf32, #tpu.memory_space<vmem>>, %arg7: memref<28x1xf32, #tpu.memory_space<vmem>>, %arg8: memref<28x8xf32, #tpu.memory_space<vmem>>, %arg9: memref<14x8xf32, #tpu.memory_space<vmem>>) attributes {dimension_semantics = [#tpu.dimension_semantics<parallel>], iteration_bounds = array<i64: 1>, scalar_prefetch = 0 : i64, scratch_operands = 0 : i64, tpu.core_type = #tpu.core_type<tc>, window_params = [{transform_indices = @transform_0, window_bounds = array<i64: 28, 8>}, {pipeline_mode = #tpu.pipeline_mode<synchronous>, transform_indices = @transform_1, window_bounds = array<i64: 20, 28>}, {pipeline_mode = #tpu.pipeline_mode<synchronous>, transform_indices = @transform_2, window_bounds = array<i64: 20, 1>}, {pipeline_mode = #tpu.pipeline_mode<synchronous>, transform_indices = @transform_3, window_bounds = array<i64: 14, 20>}, {pipeline_mode = #tpu.pipeline_mode<synchronous>, transform_indices = @transform_4, window_bounds = array<i64: 14, 1>}, {pipeline_mode = #tpu.pipeline_mode<synchronous>, transform_indices = @transform_5, window_bounds = array<i64: 28, 14>}, {pipeline_mode = #tpu.pipeline_mode<synchronous>, transform_indices = @transform_6, window_bounds = array<i64: 28, 1>}, {transform_indices = @transform_7, window_bounds = array<i64: 28, 8>}, {transform_indices = @transform_8, window_bounds = array<i64: 14, 8>}]} {
    %c0 = arith.constant 0 : index
    %c0_0 = arith.constant 0 : index
    %0 = vector.load %arg1[%c0, %c0_0] : memref<28x8xf32, #tpu.memory_space<vmem>>, vector<28x8xf32>
    %c0_1 = arith.constant 0 : index
    %c0_2 = arith.constant 0 : index
    %1 = vector.load %arg2[%c0_1, %c0_2] : memref<20x28xf32, #tpu.memory_space<vmem>>, vector<20x28xf32>
    %cst = arith.constant dense<0.000000e+00> : vector<20x8xf32>
    %2 = tpu.matmul %1, %0, %cst {dimension_numbers = #tpu.dot_dimension_numbers<[1], [0], [0], [1], [0, 0, 1, 1], [], []>} : vector<20x28xf32>, vector<28x8xf32>, vector<20x8xf32> -> vector<20x8xf32>
    %c0_3 = arith.constant 0 : index
    %c0_4 = arith.constant 0 : index
    %3 = vector.load %arg3[%c0_3, %c0_4] : memref<20x1xf32, #tpu.memory_space<vmem>>, vector<20x1xf32>
    %4 = vector.broadcast %3 : vector<20x1xf32> to vector<20x8xf32>
    %5 = arith.addf %2, %4 : vector<20x8xf32>
    %6 = arith.negf %5 : vector<20x8xf32>
    %7 = math.exp %6 : vector<20x8xf32>
    %cst_5 = arith.constant 1.000000e+00 : f32
    %8 = vector.broadcast %cst_5 : f32 to vector<20x8xf32>
    %9 = arith.addf %8, %7 : vector<20x8xf32>
    %10 = arith.divf %8, %9 : vector<20x8xf32>
    %c0_6 = arith.constant 0 : index
    %c0_7 = arith.constant 0 : index
    %11 = vector.load %arg4[%c0_6, %c0_7] : memref<14x20xf32, #tpu.memory_space<vmem>>, vector<14x20xf32>
    %cst_8 = arith.constant dense<0.000000e+00> : vector<14x8xf32>
    %12 = tpu.matmul %11, %10, %cst_8 {dimension_numbers = #tpu.dot_dimension_numbers<[1], [0], [0], [1], [0, 0, 1, 1], [], []>} : vector<14x20xf32>, vector<20x8xf32>, vector<14x8xf32> -> vector<14x8xf32>
    %c0_9 = arith.constant 0 : index
    %c0_10 = arith.constant 0 : index
    %13 = vector.load %arg5[%c0_9, %c0_10] : memref<14x1xf32, #tpu.memory_space<vmem>>, vector<14x1xf32>
    %14 = vector.broadcast %13 : vector<14x1xf32> to vector<14x8xf32>
    %15 = arith.addf %12, %14 : vector<14x8xf32>
    %16 = arith.negf %15 : vector<14x8xf32>
    %17 = math.exp %16 : vector<14x8xf32>
    %cst_11 = arith.constant 1.000000e+00 : f32
    %18 = vector.broadcast %cst_11 : f32 to vector<14x8xf32>
    %19 = arith.addf %18, %17 : vector<14x8xf32>
    %20 = arith.divf %18, %19 : vector<14x8xf32>
    %c0_12 = arith.constant 0 : index
    %c0_13 = arith.constant 0 : index
    %21 = vector.load %arg6[%c0_12, %c0_13] : memref<28x14xf32, #tpu.memory_space<vmem>>, vector<28x14xf32>
    %cst_14 = arith.constant dense<0.000000e+00> : vector<28x8xf32>
    %22 = tpu.matmul %21, %20, %cst_14 {dimension_numbers = #tpu.dot_dimension_numbers<[1], [0], [0], [1], [0, 0, 1, 1], [], []>} : vector<28x14xf32>, vector<14x8xf32>, vector<28x8xf32> -> vector<28x8xf32>
    %c0_15 = arith.constant 0 : index
    %c0_16 = arith.constant 0 : index
    %23 = vector.load %arg7[%c0_15, %c0_16] : memref<28x1xf32, #tpu.memory_space<vmem>>, vector<28x1xf32>
    %24 = vector.broadcast %23 : vector<28x1xf32> to vector<28x8xf32>
    %25 = arith.addf %22, %24 : vector<28x8xf32>
    %c0_17 = arith.constant 0 : index
    %c0_18 = arith.constant 0 : index
    %26 = vector.load %arg9[%c0_17, %c0_18] : memref<14x8xf32, #tpu.memory_space<vmem>>, vector<14x8xf32>
    tpu.vector_store %arg9[%c0_17, %c0_18], %20 {strides = array<i32>} : memref<14x8xf32, #tpu.memory_space<vmem>>, vector<14x8xf32>,
    %c0_19 = arith.constant 0 : index
    %c0_20 = arith.constant 0 : index
    %27 = vector.load %arg8[%c0_19, %c0_20] : memref<28x8xf32, #tpu.memory_space<vmem>>, vector<28x8xf32>
    tpu.vector_store %arg8[%c0_19, %c0_20], %25 {strides = array<i32>} : memref<28x8xf32, #tpu.memory_space<vmem>>, vector<28x8xf32>,
    return
  }
  func.func @transform_0(%arg0: i32) -> (i32, i32) {
    %c0_i32 = arith.constant 0 : i32
    %c0_i32_0 = arith.constant 0 : i32
    return %c0_i32, %arg0 : i32, i32
  }
  func.func @transform_1(%arg0: i32) -> (i32, i32) {
    %c0_i32 = arith.constant 0 : i32
    %c0_i32_0 = arith.constant 0 : i32
    %c0_i32_1 = arith.constant 0 : i32
    return %c0_i32, %c0_i32_0 : i32, i32
  }
  func.func @transform_2(%arg0: i32) -> (i32, i32) {
    %c0_i32 = arith.constant 0 : i32
    %c0_i32_0 = arith.constant 0 : i32
    %c0_i32_1 = arith.constant 0 : i32
    return %c0_i32, %c0_i32_0 : i32, i32
  }
  func.func @transform_3(%arg0: i32) -> (i32, i32) {
    %c0_i32 = arith.constant 0 : i32
    %c0_i32_0 = arith.constant 0 : i32
    %c0_i32_1 = arith.constant 0 : i32
    return %c0_i32, %c0_i32_0 : i32, i32
  }
  func.func @transform_4(%arg0: i32) -> (i32, i32) {
    %c0_i32 = arith.constant 0 : i32
    %c0_i32_0 = arith.constant 0 : i32
    %c0_i32_1 = arith.constant 0 : i32
    return %c0_i32, %c0_i32_0 : i32, i32
  }
  func.func @transform_5(%arg0: i32) -> (i32, i32) {
    %c0_i32 = arith.constant 0 : i32
    %c0_i32_0 = arith.constant 0 : i32
    %c0_i32_1 = arith.constant 0 : i32
    return %c0_i32, %c0_i32_0 : i32, i32
  }
  func.func @transform_6(%arg0: i32) -> (i32, i32) {
    %c0_i32 = arith.constant 0 : i32
    %c0_i32_0 = arith.constant 0 : i32
    %c0_i32_1 = arith.constant 0 : i32
    return %c0_i32, %c0_i32_0 : i32, i32
  }
  func.func @transform_7(%arg0: i32) -> (i32, i32) {
    %c0_i32 = arith.constant 0 : i32
    %c0_i32_0 = arith.constant 0 : i32
    return %c0_i32, %arg0 : i32, i32
  }
  func.func @transform_8(%arg0: i32) -> (i32, i32) {
    %c0_i32 = arith.constant 0 : i32
    %c0_i32_0 = arith.constant 0 : i32
    return %c0_i32, %arg0 : i32, i32
  }
}

</mosaic_0001>

<llo_original>
// kernel: autoencoder_forward.1
$region0: #{autoencoder_forward.1}
  #allocation0 [shape = 'u32[]', space=smem, size = 0x4, offset = 0x4, fixed_abs, tag = 'smem constant byte address 0x4 - core index']
  #allocation1 [shape = 'u32[144,128]{1,0:T(1,128)}', space=vmem, size = 0x12000, scoped, tag = 'internal scratch']
  %s0 = inlined_call_operand.vmem [shape: f32[28,8], index: 0, kind: input, shape index: {}]
  %s1 = inlined_call_operand.vmem [shape: f32[20,28], index: 1, kind: input, shape index: {}]
  %s2 = inlined_call_operand.vmem [shape: f32[20,1], index: 2, kind: input, shape index: {}]
  %s3 = inlined_call_operand.vmem [shape: f32[14,20], index: 3, kind: input, shape index: {}]
  %s4 = inlined_call_operand.vmem [shape: f32[14,1], index: 4, kind: input, shape index: {}]
  %s5 = inlined_call_operand.vmem [shape: f32[28,14], index: 5, kind: input, shape index: {}]
  %s6 = inlined_call_operand.vmem [shape: f32[28,1], index: 6, kind: input, shape index: {}]
  %s7 = inlined_call_operand.vmem [shape: f32[28,8], index: 7, kind: output, shape index: {0}]
  %s8 = inlined_call_operand.vmem [shape: f32[14,8], index: 8, kind: output, shape index: {1}]
  %9 = xla_tuple %s7, %s8
  %s10 = sld [smem:[#allocation0]]
  $region46: #{autoencoder_forward.1} parent=0
    _
  %s12 = ssub.s32 1, %s10
  %s13 = scalar_select 0, %s12, %s10
  // Predicated region
  $region2: #{autoencoder_forward.1} parent=0 // pred_check
    _
  $region3: #{autoencoder_forward.1} parent=0 // pred_check_branch
    %15 = sbr.rel (0) target = $region5
  $region4: #{autoencoder_forward.1} parent=0 // pred_region
    _
  $region5: #{autoencoder_forward.1} parent=0 // pred_fallthru
    _
  // Predicated region
  $region6: #{autoencoder_forward.1} parent=0 // pred_check
    _
  $region7: #{autoencoder_forward.1} parent=0 // pred_check_branch
    %17 = sbr.rel (0) target = $region9
  $region8: #{autoencoder_forward.1} parent=0 // pred_region
    _
  $region9: #{autoencoder_forward.1} parent=0 // pred_fallthru
    _
  // Predicated region
  $region10: #{autoencoder_forward.1} parent=0 // pred_check
    _
  $region11: #{autoencoder_forward.1} parent=0 // pred_check_branch
    %19 = sbr.rel (0) target = $region13
  $region12: #{autoencoder_forward.1} parent=0 // pred_region
    _
  $region13: #{autoencoder_forward.1} parent=0 // pred_fallthru
    _
  // Predicated region
  $region14: #{autoencoder_forward.1} parent=0 // pred_check
    _
  $region15: #{autoencoder_forward.1} parent=0 // pred_check_branch
    %21 = sbr.rel (0) target = $region17
  $region16: #{autoencoder_forward.1} parent=0 // pred_region
    _
  $region17: #{autoencoder_forward.1} parent=0 // pred_fallthru
    _
  // Predicated region
  $region18: #{autoencoder_forward.1} parent=0 // pred_check
    _
  $region19: #{autoencoder_forward.1} parent=0 // pred_check_branch
    %23 = sbr.rel (0) target = $region21
  $region20: #{autoencoder_forward.1} parent=0 // pred_region
    _
  $region21: #{autoencoder_forward.1} parent=0 // pred_fallthru
    _
  // Predicated region
  $region22: #{autoencoder_forward.1} parent=0 // pred_check
    _
  $region23: #{autoencoder_forward.1} parent=0 // pred_check_branch
    %25 = sbr.rel (0) target = $region25
  $region24: #{autoencoder_forward.1} parent=0 // pred_region
    _
  $region25: #{autoencoder_forward.1} parent=0 // pred_fallthru
    _
  // Predicated region
  $region26: #{autoencoder_forward.1} parent=0 // pred_check
    _
  $region27: #{autoencoder_forward.1} parent=0 // pred_check_branch
    %27 = sbr.rel (0) target = $region29
  $region28: #{autoencoder_forward.1} parent=0 // pred_region
    _
  $region29: #{autoencoder_forward.1} parent=0 // pred_fallthru
    _
  %v28 = vld [vmem:[%s0] sm:$0xff]
  %v29 = vld [vmem:[%s0 + $0x8] sm:$0xff]
  %v30 = vld [vmem:[%s0 + $0x10] sm:$0xff]
  %v31 = vld [vmem:[%s0 + $0x18] sm:$0xf]
  %v32 = vld [vmem:[%s1] sm:$0xff]
  %v33 = vld [vmem:[%s1 + $0x8] sm:$0xff]
  %v34 = vld [vmem:[%s1 + $0x10] sm:$0xf]
  %v35 = vld [vmem:[%s2] sm:$0xff]
  %v36 = vld [vmem:[%s2 + $0x8] sm:$0xff]
  %v37 = vld [vmem:[%s2 + $0x10] sm:$0xf]
  %39 = vset.pattern.permute.xlu0 0
  %40 = vperm.xlu0 %39, %v35
  %v41 = vpop.permute.xlu0 %40
  %44 = vset.pattern.permute.xlu0 0
  %45 = vperm.xlu0 %44, %v36
  %v46 = vpop.permute.xlu0 %45
  %49 = vset.pattern.permute.xlu0 0
  %50 = vperm.xlu0 %49, %v37
  %v51 = vpop.permute.xlu0 %50
  %vm53 = vcmask 228352
  %v55 = vsel %vm53, %v32, 0
  %v58 = vsel %vm53, %v33, 0
  %v61 = vsel %vm53, %v34, 0
  %vm63 = vcmask 1043456
  %v65 = vsel %vm63, %v31, 0
  %67 = vmatprep.subr.mxu0 0.0
  %68 = vmatpush1.msra.mxu0 0.0
  %69 = vmatprep.subr.mxu0 0.0
  %70 = vmatpush1.msra.mxu0 0.0
  %71 = vmatprep.subr.mxu0 0.0
  %72 = vmatpush1.msra.mxu0 0.0
  %73 = vmatprep.subr.mxu0 0.0
  %74 = vmatpush1.msra.mxu0 0.0
  %75 = vmatprep.subr.mxu0 0.0
  %76 = vmatpush1.msra.mxu0 0.0
  %77 = vmatprep.subr.mxu0 0.0
  %78 = vmatpush1.msra.mxu0 0.0
  %79 = vmatprep.subr.mxu0 0.0
  %80 = vmatpush1.msra.mxu0 0.0
  %81 = vmatprep.subr.mxu0 0.0
  %82 = vmatpush1.msra.mxu0 0.0
  %83 = vmatprep.subr.mxu0 0.0
  %84 = vmatpush1.msra.mxu0 0.0
  %85 = vmatprep.subr.mxu0 0.0
  %86 = vmatpush1.msra.mxu0 0.0
  %87 = vmatprep.subr.mxu0 0.0
  %88 = vmatpush1.msra.mxu0 0.0
  %89 = vmatprep.subr.mxu0 0.0
  %90 = vmatpush1.msra.mxu0 0.0
  %91 = vmatprep.subr.mxu0 0.0
  %92 = vmatpush1.msra.mxu0 %v65
  %93 = vmatprep.subr.mxu0 0.0
  %94 = vmatpush1.msra.mxu0 %v30
  %95 = vmatprep.subr.mxu0 0.0
  %96 = vmatpush1.msra.mxu0 %v29
  %97 = vmatprep.subr.mxu0 0.0
  %98 = vmatpush1.msra.mxu0 %v28
  %99 = vmatprep.subr.mxu0 0.0
  %100 = vmatpush2.msra.mxu0 0.0
  %101 = vmatprep.subr.mxu0 0.0
  %102 = vmatpush2.msra.mxu0 0.0
  %103 = vmatprep.subr.mxu0 0.0
  %104 = vmatpush2.msra.mxu0 0.0
  %105 = vmatprep.subr.mxu0 0.0
  %106 = vmatpush2.msra.mxu0 0.0
  %107 = vmatprep.subr.mxu0 0.0
  %108 = vmatpush2.msra.mxu0 0.0
  %109 = vmatprep.subr.mxu0 0.0
  %110 = vmatpush2.msra.mxu0 0.0
  %111 = vmatprep.subr.mxu0 0.0
  %112 = vmatpush2.msra.mxu0 0.0
  %113 = vmatprep.subr.mxu0 0.0
  %114 = vmatpush2.msra.mxu0 0.0
  %115 = vmatprep.subr.mxu0 0.0
  %116 = vmatpush2.msra.mxu0 0.0
  %117 = vmatprep.subr.mxu0 0.0
  %118 = vmatpush2.msra.mxu0 0.0
  %119 = vmatprep.subr.mxu0 0.0
  %120 = vmatpush2.msra.mxu0 0.0
  %121 = vmatprep.subr.mxu0 0.0
  %122 = vmatpush2.msra.mxu0 0.0
  %123 = vmatprep.subr.mxu0 0.0
  %124 = vmatpush2.msra.mxu0 0.0
  %125 = vmatprep.subr.mxu0 0.0
  %126 = vmatpush2.msra.mxu0 0.0
  %127 = vmatprep.subr.mxu0 0.0
  %128 = vmatpush2.msra.mxu0 0.0
  %129 = vmatprep.subr.mxu0 0.0
  %130 = vmatpush2.msra.mxu0 0.0
  %131 = vmatprep.mubr.f32.mxu0 0.0
  %132 = vmatmul.mubr.f32.gmra.mxu0 %v55
  %v133 = vpop.f32.mrf.mxu0
  %v134 = vadd.f32 %v41, %v133
  %v135 = vpop.f32.mrf.mxu0
  %136 = vmatprep.mubr.f32.mxu0 0.0
  %137 = vmatmul.mubr.f32.gmra.mxu0 %v58
  %v138 = vpop.f32.mrf.mxu0
  %v139 = vadd.f32 %v46, %v138
  %v140 = vpop.f32.mrf.mxu0
  %141 = vmatprep.mubr.f32.mxu0 0.0
  %142 = vmatmul.mubr.f32.gmra.mxu0 %v61
  %v143 = vpop.f32.mrf.mxu0
  %v144 = vadd.f32 %v51, %v143
  %v145 = vpop.f32.mrf.mxu0
  %146 = vdwg.mxu0
  %v147 = vxor.u32 %v134, 2147483648
  %v148 = vxor.u32 %v139, 2147483648
  %v149 = vxor.u32 %v144, 2147483648
  %v150 = vmul.f32 %v147, 1.442695
  %v151 = vpow.pop %v150
  %v152 = vmul.f32 %v148, 1.442695
  %v153 = vpow.pop %v152
  %v154 = vmul.f32 %v149, 1.442695
  %v155 = vpow.pop %v154
  %v156 = vadd.f32 %v151, 1.0
  %v157 = vadd.f32 %v153, 1.0
  %v158 = vadd.f32 %v155, 1.0
  %v159 = vrcp.pop %v156
  %v160 = vmul.f32 1.0, %v159
  %v161 = vrcp.pop %v157
  %v162 = vmul.f32 1.0, %v161
  %v163 = vrcp.pop %v158
  %v164 = vmul.f32 1.0, %v163
  %v165 = vld [vmem:[%s3] sm:$0xff]
  %v166 = vld [vmem:[%s3 + $0x8] sm:$0x3f]
  %v167 = vld [vmem:[%s4] sm:$0xff]
  %v168 = vld [vmem:[%s4 + $0x8] sm:$0x3f]
  %170 = vset.pattern.permute.xlu0 0
  %171 = vperm.xlu0 %170, %v167
  %v172 = vpop.permute.xlu0 %171
  %175 = vset.pattern.permute.xlu0 0
  %176 = vperm.xlu0 %175, %v168
  %v177 = vpop.permute.xlu0 %176
  %vm179 = vcmask 162816
  %v181 = vsel %vm179, %v165, 0
  %v184 = vsel %vm179, %v166, 0
  %v187 = vsel %vm63, %v164, 0
  %189 = vmatprep.subr.mxu0 0.0
  %190 = vmatpush1.msra.mxu0 0.0
  %191 = vmatprep.subr.mxu0 0.0
  %192 = vmatpush1.msra.mxu0 0.0
  %193 = vmatprep.subr.mxu0 0.0
  %194 = vmatpush1.msra.mxu0 0.0
  %195 = vmatprep.subr.mxu0 0.0
  %196 = vmatpush1.msra.mxu0 0.0
  %197 = vmatprep.subr.mxu0 0.0
  %198 = vmatpush1.msra.mxu0 0.0
  %199 = vmatprep.subr.mxu0 0.0
  %200 = vmatpush1.msra.mxu0 0.0
  %201 = vmatprep.subr.mxu0 0.0
  %202 = vmatpush1.msra.mxu0 0.0
  %203 = vmatprep.subr.mxu0 0.0
  %204 = vmatpush1.msra.mxu0 0.0
  %205 = vmatprep.subr.mxu0 0.0
  %206 = vmatpush1.msra.mxu0 0.0
  %207 = vmatprep.subr.mxu0 0.0
  %208 = vmatpush1.msra.mxu0 0.0
  %209 = vmatprep.subr.mxu0 0.0
  %210 = vmatpush1.msra.mxu0 0.0
  %211 = vmatprep.subr.mxu0 0.0
  %212 = vmatpush1.msra.mxu0 0.0
  %213 = vmatprep.subr.mxu0 0.0
  %214 = vmatpush1.msra.mxu0 0.0
  %215 = vmatprep.subr.mxu0 0.0
  %216 = vmatpush1.msra.mxu0 %v187
  %217 = vmatprep.subr.mxu0 0.0
  %218 = vmatpush1.msra.mxu0 %v162
  %219 = vmatprep.subr.mxu0 0.0
  %220 = vmatpush1.msra.mxu0 %v160
  %221 = vmatprep.subr.mxu0 0.0
  %222 = vmatpush2.msra.mxu0 0.0
  %223 = vmatprep.subr.mxu0 0.0
  %224 = vmatpush2.msra.mxu0 0.0
  %225 = vmatprep.subr.mxu0 0.0
  %226 = vmatpush2.msra.mxu0 0.0
  %227 = vmatprep.subr.mxu0 0.0
  %228 = vmatpush2.msra.mxu0 0.0
  %229 = vmatprep.subr.mxu0 0.0
  %230 = vmatpush2.msra.mxu0 0.0
  %231 = vmatprep.subr.mxu0 0.0
  %232 = vmatpush2.msra.mxu0 0.0
  %233 = vmatprep.subr.mxu0 0.0
  %234 = vmatpush2.msra.mxu0 0.0
  %235 = vmatprep.subr.mxu0 0.0
  %236 = vmatpush2.msra.mxu0 0.0
  %237 = vmatprep.subr.mxu0 0.0
  %238 = vmatpush2.msra.mxu0 0.0
  %239 = vmatprep.subr.mxu0 0.0
  %240 = vmatpush2.msra.mxu0 0.0
  %241 = vmatprep.subr.mxu0 0.0
  %242 = vmatpush2.msra.mxu0 0.0
  %243 = vmatprep.subr.mxu0 0.0
  %244 = vmatpush2.msra.mxu0 0.0
  %245 = vmatprep.subr.mxu0 0.0
  %246 = vmatpush2.msra.mxu0 0.0
  %247 = vmatprep.subr.mxu0 0.0
  %248 = vmatpush2.msra.mxu0 0.0
  %249 = vmatprep.subr.mxu0 0.0
  %250 = vmatpush2.msra.mxu0 0.0
  %251 = vmatprep.subr.mxu0 0.0
  %252 = vmatpush2.msra.mxu0 0.0
  %253 = vmatprep.mubr.f32.mxu0 0.0
  %254 = vmatmul.mubr.f32.gmra.mxu0 %v181
  %v255 = vpop.f32.mrf.mxu0
  %v256 = vadd.f32 %v172, %v255
  %v257 = vpop.f32.mrf.mxu0
  %258 = vmatprep.mubr.f32.mxu0 0.0
  %259 = vmatmul.mubr.f32.gmra.mxu0 %v184
  %v260 = vpop.f32.mrf.mxu0
  %v261 = vadd.f32 %v177, %v260
  %v262 = vpop.f32.mrf.mxu0
  %263 = vdwg.mxu0
  %v264 = vxor.u32 %v256, 2147483648
  %v265 = vxor.u32 %v261, 2147483648
  %v266 = vmul.f32 %v264, 1.442695
  %v267 = vpow.pop %v266
  %v268 = vmul.f32 %v265, 1.442695
  %v269 = vpow.pop %v268
  %v270 = vadd.f32 %v267, 1.0
  %v271 = vadd.f32 %v269, 1.0
  %v272 = vrcp.pop %v270
  %v273 = vmul.f32 1.0, %v272
  %v274 = vrcp.pop %v271
  %v275 = vmul.f32 1.0, %v274
  %v276 = vld [vmem:[%s5] sm:$0xff]
  %v277 = vld [vmem:[%s5 + $0x8] sm:$0xff]
  %v278 = vld [vmem:[%s5 + $0x10] sm:$0xff]
  %v279 = vld [vmem:[%s5 + $0x18] sm:$0xf]
  %v280 = vld [vmem:[%s6] sm:$0xff]
  %v281 = vld [vmem:[%s6 + $0x8] sm:$0xff]
  %v282 = vld [vmem:[%s6 + $0x10] sm:$0xff]
  %v283 = vld [vmem:[%s6 + $0x18] sm:$0xf]
  %285 = vset.pattern.permute.xlu0 0
  %286 = vperm.xlu0 %285, %v280
  %v287 = vpop.permute.xlu0 %286
  %290 = vset.pattern.permute.xlu0 0
  %291 = vperm.xlu0 %290, %v281
  %v292 = vpop.permute.xlu0 %291
  %295 = vset.pattern.permute.xlu0 0
  %296 = vperm.xlu0 %295, %v282
  %v297 = vpop.permute.xlu0 %296
  %300 = vset.pattern.permute.xlu0 0
  %301 = vperm.xlu0 %300, %v283
  %v302 = vpop.permute.xlu0 %301
  %vm304 = vcmask 113664
  %v306 = vsel %vm304, %v276, 0
  %v309 = vsel %vm304, %v277, 0
  %v312 = vsel %vm304, %v278, 0
  %v315 = vsel %vm304, %v279, 0
  %vm317 = vcmask 1045504
  %v319 = vsel %vm317, %v275, 0
  %321 = vmatprep.subr.mxu0 0.0
  %322 = vmatpush1.msra.mxu0 0.0
  %323 = vmatprep.subr.mxu0 0.0
  %324 = vmatpush1.msra.mxu0 0.0
  %325 = vmatprep.subr.mxu0 0.0
  %326 = vmatpush1.msra.mxu0 0.0
  %327 = vmatprep.subr.mxu0 0.0
  %328 = vmatpush1.msra.mxu0 0.0
  %329 = vmatprep.subr.mxu0 0.0
  %330 = vmatpush1.msra.mxu0 0.0
  %331 = vmatprep.subr.mxu0 0.0
  %332 = vmatpush1.msra.mxu0 0.0
  %333 = vmatprep.subr.mxu0 0.0
  %334 = vmatpush1.msra.mxu0 0.0
  %335 = vmatprep.subr.mxu0 0.0
  %336 = vmatpush1.msra.mxu0 0.0
  %337 = vmatprep.subr.mxu0 0.0
  %338 = vmatpush1.msra.mxu0 0.0
  %339 = vmatprep.subr.mxu0 0.0
  %340 = vmatpush1.msra.mxu0 0.0
  %341 = vmatprep.subr.mxu0 0.0
  %342 = vmatpush1.msra.mxu0 0.0
  %343 = vmatprep.subr.mxu0 0.0
  %344 = vmatpush1.msra.mxu0 0.0
  %345 = vmatprep.subr.mxu0 0.0
  %346 = vmatpush1.msra.mxu0 0.0
  %347 = vmatprep.subr.mxu0 0.0
  %348 = vmatpush1.msra.mxu0 0.0
  %349 = vmatprep.subr.mxu0 0.0
  %350 = vmatpush1.msra.mxu0 %v319
  %351 = vmatprep.subr.mxu0 0.0
  %352 = vmatpush1.msra.mxu0 %v273
  %353 = vmatprep.subr.mxu0 0.0
  %354 = vmatpush2.msra.mxu0 0.0
  %355 = vmatprep.subr.mxu0 0.0
  %356 = vmatpush2.msra.mxu0 0.0
  %357 = vmatprep.subr.mxu0 0.0
  %358 = vmatpush2.msra.mxu0 0.0
  %359 = vmatprep.subr.mxu0 0.0
  %360 = vmatpush2.msra.mxu0 0.0
  %361 = vmatprep.subr.mxu0 0.0
  %362 = vmatpush2.msra.mxu0 0.0
  %363 = vmatprep.subr.mxu0 0.0
  %364 = vmatpush2.msra.mxu0 0.0
  %365 = vmatprep.subr.mxu0 0.0
  %366 = vmatpush2.msra.mxu0 0.0
  %367 = vmatprep.subr.mxu0 0.0
  %368 = vmatpush2.msra.mxu0 0.0
  %369 = vmatprep.subr.mxu0 0.0
  %370 = vmatpush2.msra.mxu0 0.0
  %371 = vmatprep.subr.mxu0 0.0
  %372 = vmatpush2.msra.mxu0 0.0
  %373 = vmatprep.subr.mxu0 0.0
  %374 = vmatpush2.msra.mxu0 0.0
  %375 = vmatprep.subr.mxu0 0.0
  %376 = vmatpush2.msra.mxu0 0.0
  %377 = vmatprep.subr.mxu0 0.0
  %378 = vmatpush2.msra.mxu0 0.0
  %379 = vmatprep.subr.mxu0 0.0
  %380 = vmatpush2.msra.mxu0 0.0
  %381 = vmatprep.subr.mxu0 0.0
  %382 = vmatpush2.msra.mxu0 0.0
  %383 = vmatprep.subr.mxu0 0.0
  %384 = vmatpush2.msra.mxu0 0.0
  %385 = vmatprep.mubr.f32.mxu0 0.0
  %386 = vmatmul.mubr.f32.gmra.mxu0 %v306
  %v387 = vpop.f32.mrf.mxu0
  %v388 = vadd.f32 %v287, %v387
  %v389 = vpop.f32.mrf.mxu0
  %390 = vmatprep.mubr.f32.mxu0 0.0
  %391 = vmatmul.mubr.f32.gmra.mxu0 %v309
  %v392 = vpop.f32.mrf.mxu0
  %v393 = vadd.f32 %v292, %v392
  %v394 = vpop.f32.mrf.mxu0
  %395 = vmatprep.mubr.f32.mxu0 0.0
  %396 = vmatmul.mubr.f32.gmra.mxu0 %v312
  %v397 = vpop.f32.mrf.mxu0
  %v398 = vadd.f32 %v297, %v397
  %v399 = vpop.f32.mrf.mxu0
  %400 = vmatprep.mubr.f32.mxu0 0.0
  %401 = vmatmul.mubr.f32.gmra.mxu0 %v315
  %v402 = vpop.f32.mrf.mxu0
  %v403 = vadd.f32 %v302, %v402
  %v404 = vpop.f32.mrf.mxu0
  %405 = vdwg.mxu0
  %vm406 = vcmask 64512
  %407 = vst.msk [vmem:[%s8] sm:$0xff] %vm406, %v273
  %vm408 = vcmask 62464
  %409 = vst.msk [vmem:[%s8 + $0x8] sm:$0x3f] %vm408, %v275
  %410 = vst.msk [vmem:[%s7] sm:$0xff] %vm406, %v388
  %411 = vst.msk [vmem:[%s7 + $0x8] sm:$0xff] %vm406, %v393
  %412 = vst.msk [vmem:[%s7 + $0x10] sm:$0xff] %vm406, %v398
  %vm413 = vcmask 60416
  %414 = vst.msk [vmem:[%s7 + $0x18] sm:$0xf] %vm413, %v403
  // Predicated region
  $region30: #{autoencoder_forward.1} parent=0 // pred_check
    _
  $region31: #{autoencoder_forward.1} parent=0 // pred_check_branch
    %416 = sbr.rel (0) target = $region33
  $region32: #{autoencoder_forward.1} parent=0 // pred_region
    _
  $region33: #{autoencoder_forward.1} parent=0 // pred_fallthru
    _
  // Predicated region
  $region34: #{autoencoder_forward.1} parent=0 // pred_check
    _
  $region35: #{autoencoder_forward.1} parent=0 // pred_check_branch
    %418 = sbr.rel (0) target = $region37
  $region36: #{autoencoder_forward.1} parent=0 // pred_region
    _
  $region37: #{autoencoder_forward.1} parent=0 // pred_fallthru
    _
  // Predicated region
  $region38: #{autoencoder_forward.1} parent=0 // pred_check
    _
  $region39: #{autoencoder_forward.1} parent=0 // pred_check_branch
    %420 = sbr.rel (0) target = $region41
  $region40: #{autoencoder_forward.1} parent=0 // pred_region
    _
  $region41: #{autoencoder_forward.1} parent=0 // pred_fallthru
    _
  // Predicated region
  $region42: #{autoencoder_forward.1} parent=0 // pred_check
    _
  $region43: #{autoencoder_forward.1} parent=0 // pred_check_branch
    %422 = sbr.rel (0) target = $region45
  $region44: #{autoencoder_forward.1} parent=0 // pred_region
    _
  $region45: #{autoencoder_forward.1} parent=0 // pred_fallthru
    _

</llo_original>
